<compile_context>
chip_gen: v7x
topology: tpu7x:2x2x1
jax: 0.10.0
libtpu: 0.0.40
codegen_flags: <defaults>
</compile_context>

<pallas_src>
import functools

import jax
import jax.numpy as jnp
from jax.experimental import pallas as pl
from jax.experimental.pallas import tpu as pltpu


def _expand_kernel(x_ref, scat_ref, o_ref, *, s, cp, rows, kw, ow, fuse):
    # x_ref:    (s*s*cp, rows, kw)   folded input slab (all channels, one H-tile)
    # scat_ref: (s*s, kw, ow)        one-hot lane scatter per channel group
    # o_ref:    (cp, rows, ow)       folded, lane-dense output slab
    g_cnt = s * s
    out_dtype = o_ref.dtype
    # One-hot weights + MXU accumulation make the relayout exact; popping the
    # result directly in the output dtype halves result/store traffic for bf16.
    if out_dtype == jnp.float32 or out_dtype == jnp.bfloat16:
        pet = out_dtype
    else:
        pet = jnp.float32

    if fuse:
        # One matmul per grid step: concatenate the s^2 channel-group slabs
        # along lanes (kw % 128 == 0 -> vreg-aligned) and contract against the
        # stacked scatter.  No partial-result adds, no extra MXU pops.
        lhs = jnp.concatenate(
            [x_ref[pl.ds(g * cp, cp), :, :] for g in range(g_cnt)], axis=-1)
        res = jnp.dot(lhs.reshape(cp * rows, g_cnt * kw),
                      scat_ref[...].reshape(g_cnt * kw, ow),
                      preferred_element_type=pet)
    else:
        res = None
        for g in range(g_cnt):                          # static, unrolled
            slab = x_ref[pl.ds(g * cp, cp), :, :]       # (cp, rows, kw)
            part = jnp.dot(slab.reshape(cp * rows, kw), scat_ref[g],
                           preferred_element_type=pet)
            # Exact even in bf16: parts occupy disjoint one-hot columns.
            res = part if res is None else res + part

    o_ref[...] = res.reshape(cp, rows, ow).astype(out_dtype)


def _pick_fold(h, w, s):
    """Smallest k dividing H so the contraction width k*W reaches the MXU width
    (>=128) and the stored lane width k*s*s*W is 128-aligned when possible.
    Smallest such k keeps the extra one-hot MAC work minimal."""
    divs = [d for d in range(1, h + 1) if h % d == 0]
    for d in divs:
        if d * w >= 128 and (d * w * s * s) % 128 == 0:
            return d
    for d in divs:
        if d * w >= 128:
            return d
    return divs[-1]          # tiny inputs: fold everything


def _pick_row_tile(hk, n_batch, bytes_per_row, target_bytes, min_grid=4):
    """Row tile over the folded H axis: a multiple of 8 (or the full extent),
    under the per-block VMEM target, preferring >= min_grid total grid points
    (v7x megacore + pipelining)."""
    cands = sorted({t for t in range(8, hk + 1, 8) if hk % t == 0} | {hk})
    fit = [t for t in cands if t * bytes_per_row <= target_bytes] or [cands[0]]
    good = [t for t in fit if n_batch * (hk // t) >= min_grid]
    return max(good) if good else max(fit)


def expand(x, gain=2, *, k=None, h_tile=None, fuse=None):
    """Pallas equivalent of Expand(gain).forward(x) for NCHW input x."""
    N, C, H, W = x.shape
    s = int(gain)
    assert s >= 1 and C % (s * s) == 0, "C must be divisible by gain**2"
    # TODO(synk): integer dtypes would need a non-MXU copy path (v7x MXU has no
    # integer mode); guard to floating types for now.
    assert jnp.issubdtype(x.dtype, jnp.floating), "expand: floating dtypes only"
    cp = C // (s * s)
    G = s * s

    if k is None:
        k = _pick_fold(H, W, s)
    assert H % k == 0, "k must divide H"
    Hk = H // k
    kW = k * W
    ow = k * s * s * W
    if fuse is None:
        fuse = (kW % 128 == 0)          # lane concat is vreg-aligned -> cheap

    # Generation-aware budgets.
    try:
        info = pltpu.get_tpu_info()
        vmem_cap = int(getattr(info, "vmem_capacity_bytes", 0)) or 64 * 2**20
    except Exception:
        vmem_cap = 64 * 2**20           # conservative (v7x per-TC VMEM)
    target_block_bytes = 6 * 2**20 if vmem_cap >= 96 * 2**20 else 2 * 2**20

    itemsize = x.dtype.itemsize
    bytes_per_row = C * kW * itemsize   # one folded H-row across all channels
    if h_tile is None:
        h_tile = _pick_row_tile(Hk, N, bytes_per_row, target_block_bytes)
    assert Hk % h_tile == 0 and (h_tile % 8 == 0 or h_tile == Hk), \
        "h_tile must divide H//k and be a multiple of 8 (or the full extent)"
    n_tiles = Hk // h_tile

    # VMEM budget computed from actual block sizes (double-buffered) + slack.
    in_block = C * h_tile * kW * itemsize
    out_block = cp * h_tile * ow * itemsize
    scat_bytes = G * kW * ow * itemsize
    need = 2 * (in_block + out_block + scat_bytes)
    # TODO(synk): add a channel-tiling grid axis if a single 8-row slab of all
    # channels ever exceeds this budget (very large C*W).
    assert need <= (3 * vmem_cap) // 4, (
        f"blocks too large for VMEM ({need} B of {vmem_cap} B); reduce h_tile/k")
    vmem_limit = int(min(vmem_cap, max(need + 8 * 2**20, 32 * 2**20)))

    # One-hot scatter constants (exact 0/1 weights), kept in the input dtype:
    #   scat[g, hl*W + w, (hl*s + a)*W*s + w*s + b] = 1   with g = a*s + b.
    g_idx = jnp.arange(G)
    a = g_idx // s
    b = g_idx % s
    r = jnp.arange(kW)
    hl = r // W
    w = r % W
    col_tgt = (hl[None, :] * s + a[:, None]) * (W * s) + w[None, :] * s + b[:, None]
    col = jnp.arange(ow)
    scat = (col[None, None, :] == col_tgt[:, :, None]).astype(x.dtype)  # (G,kW,ow)

    # Free, contiguous views: fold k H-rows into lanes on both sides.
    x2 = x.reshape(N, C, Hk, kW)

    out4 = pl.pallas_call(
        functools.partial(_expand_kernel, s=s, cp=cp, rows=h_tile,
                          kw=kW, ow=ow, fuse=fuse),
        out_shape=jax.ShapeDtypeStruct((N, cp, Hk, ow), x.dtype),
        grid=(N, n_tiles),
        in_specs=[
            # full channel slab, one folded-H tile, full (folded) lane width
            pl.BlockSpec((None, C, h_tile, kW), lambda n, t: (n, 0, t, 0)),
            # scatter constants: constant block index -> stays resident
            # (pl.Buffered(1) would also drop its second buffer; left default).
            pl.BlockSpec((G, kW, ow), lambda n, t: (0, 0, 0)),
        ],
        out_specs=pl.BlockSpec((None, cp, h_tile, ow), lambda n, t: (n, 0, t, 0)),
        compiler_params=pltpu.CompilerParams(
            dimension_semantics=("parallel", "parallel"),
            vmem_limit_bytes=vmem_limit,
        ),
    )(x2, scat)

    # Contiguous (zero-shuffle) view back to the PyTorch output layout:
    #   hh*(k*s*W*s) + (hl*s + a)*(W*s) + (w*s + b)
    #     == ((hh*k + hl)*s + a)*(W*s) + (w*s + b)
    return out4.reshape(N, cp, H * s, W * s)


def expand_reference(x, gain=2):
    """Pure-JAX mirror of the PyTorch forward (for verification)."""
    N, C, H, W = x.shape
    s = gain
    x5 = x.reshape(N, s, s, C // (s * s), H, W)
    xp = jnp.transpose(x5, (0, 3, 4, 1, 5, 2))
    return xp.reshape(N, C // (s * s), H * s, W * s)


if __name__ == "__main__":
    # Expand has no learnable parameters; only the integer `gain` (default 2).
    key = jax.random.PRNGKey(0)
    x = jax.random.normal(key, (2, 8, 16, 16), dtype=jnp.float32)  # N, C, H, W
    ref = expand_reference(x, gain=2)

    out_auto = expand(x, gain=2)            # auto fold (k=8): fused single-matmul path
    jax.block_until_ready(out_auto)
    out_loop = expand(x, gain=2, k=1)       # unfolded: per-group loop path, multi H-tile
    jax.block_until_ready(out_loop)
    out_fold = expand(x, gain=2, k=4)       # folded but unaligned: loop path with fold
    jax.block_until_ready(out_fold)

    assert out_auto.shape == ref.shape == (2, 2, 32, 32), (out_auto.shape, ref.shape)
    assert jnp.allclose(out_auto, ref, atol=1e-6, rtol=1e-6), "fused path mismatch"
    assert jnp.allclose(out_loop, ref, atol=1e-6, rtol=1e-6), "loop path mismatch"
    assert jnp.allclose(out_fold, ref, atol=1e-6, rtol=1e-6), "folded loop mismatch"

    # bf16 path: result is popped from the MXU directly in bf16 (exact relayout).
    xb = x.astype(jnp.bfloat16)
    out_bf16 = expand(xb, gain=2)
    jax.block_until_ready(out_bf16)
    ref_bf16 = expand_reference(xb, gain=2)
    assert out_bf16.dtype == jnp.bfloat16
    assert jnp.allclose(out_bf16.astype(jnp.float32), ref_bf16.astype(jnp.float32),
                        atol=1e-2, rtol=1e-2), "bf16 path mismatch"

    print("KERNEL_OK")
</pallas_src>

<mosaic_0001>
module attributes {stable_mosaic.version = 11 : i64} {
  func.func @_expand_kernel(%arg0: i32, %arg1: i32, %arg2: memref<1x8x2x128xf32, #tpu.memory_space<vmem>>, %arg3: memref<4x128x512xf32, #tpu.memory_space<vmem>>, %arg4: memref<1x2x2x512xf32, #tpu.memory_space<vmem>>) attributes {dimension_semantics = [#tpu.dimension_semantics<parallel>, #tpu.dimension_semantics<parallel>], iteration_bounds = array<i64: 2, 1>, scalar_prefetch = 0 : i64, scratch_operands = 0 : i64, tpu.core_type = #tpu.core_type<tc>, window_params = [{transform_indices = @transform_0, window_bounds = array<i64: 1, 8, 2, 128>}, {pipeline_mode = #tpu.pipeline_mode<synchronous>, transform_indices = @transform_1, window_bounds = array<i64: 4, 128, 512>}, {transform_indices = @transform_2, window_bounds = array<i64: 1, 2, 2, 512>}]} {
    %c0 = arith.constant 0 : index
    %c0_0 = arith.constant 0 : index
    %c0_1 = arith.constant 0 : index
    %c0_2 = arith.constant 0 : index
    %0 = vector.load %arg2[%c0, %c0_0, %c0_1, %c0_2] : memref<1x8x2x128xf32, #tpu.memory_space<vmem>>, vector<1x2x2x128xf32>
    %1 = vector.shape_cast %0 : vector<1x2x2x128xf32> to vector<2x2x128xf32>
    %c0_3 = arith.constant 0 : index
    %c2 = arith.constant 2 : index
    %c0_4 = arith.constant 0 : index
    %c0_5 = arith.constant 0 : index
    %2 = vector.load %arg2[%c0_3, %c2, %c0_4, %c0_5] : memref<1x8x2x128xf32, #tpu.memory_space<vmem>>, vector<1x2x2x128xf32>
    %3 = vector.shape_cast %2 : vector<1x2x2x128xf32> to vector<2x2x128xf32>
    %c0_6 = arith.constant 0 : index
    %c4 = arith.constant 4 : index
    %c0_7 = arith.constant 0 : index
    %c0_8 = arith.constant 0 : index
    %4 = vector.load %arg2[%c0_6, %c4, %c0_7, %c0_8] : memref<1x8x2x128xf32, #tpu.memory_space<vmem>>, vector<1x2x2x128xf32>
    %5 = vector.shape_cast %4 : vector<1x2x2x128xf32> to vector<2x2x128xf32>
    %c0_9 = arith.constant 0 : index
    %c6 = arith.constant 6 : index
    %c0_10 = arith.constant 0 : index
    %c0_11 = arith.constant 0 : index
    %6 = vector.load %arg2[%c0_9, %c6, %c0_10, %c0_11] : memref<1x8x2x128xf32, #tpu.memory_space<vmem>>, vector<1x2x2x128xf32>
    %7 = vector.shape_cast %6 : vector<1x2x2x128xf32> to vector<2x2x128xf32>
    %8 = tpu.concatenate %1, %3, %5, %7 in 2 : vector<2x2x128xf32>, vector<2x2x128xf32>, vector<2x2x128xf32>, vector<2x2x128xf32> -> vector<2x2x512xf32>
    %9 = vector.shape_cast %8 : vector<2x2x512xf32> to vector<4x512xf32>
    %c0_12 = arith.constant 0 : index
    %c0_13 = arith.constant 0 : index
    %c0_14 = arith.constant 0 : index
    %10 = vector.load %arg3[%c0_12, %c0_13, %c0_14] : memref<4x128x512xf32, #tpu.memory_space<vmem>>, vector<4x128x512xf32>
    %11 = vector.shape_cast %10 : vector<4x128x512xf32> to vector<512x512xf32>
    %cst = arith.constant dense<0.000000e+00> : vector<4x512xf32>
    %12 = tpu.matmul %9, %11, %cst {dimension_numbers = #tpu.dot_dimension_numbers<[1], [0], [0], [1], [0, 0, 1, 1], [], []>} : vector<4x512xf32>, vector<512x512xf32>, vector<4x512xf32> -> vector<4x512xf32>
    %13 = vector.shape_cast %12 : vector<4x512xf32> to vector<2x2x512xf32>
    %c0_15 = arith.constant 0 : index
    %c0_16 = arith.constant 0 : index
    %c0_17 = arith.constant 0 : index
    %c0_18 = arith.constant 0 : index
    %14 = vector.load %arg4[%c0_15, %c0_16, %c0_17, %c0_18] : memref<1x2x2x512xf32, #tpu.memory_space<vmem>>, vector<1x2x2x512xf32>
    %15 = vector.shape_cast %14 : vector<1x2x2x512xf32> to vector<2x2x512xf32>
    %16 = vector.shape_cast %13 : vector<2x2x512xf32> to vector<1x2x2x512xf32>
    tpu.vector_store %arg4[%c0_15, %c0_16, %c0_17, %c0_18], %16 {strides = array<i32>} : memref<1x2x2x512xf32, #tpu.memory_space<vmem>>, vector<1x2x2x512xf32>,
    return
  }
  func.func @transform_0(%arg0: i32, %arg1: i32) -> (i32, i32, i32, i32) {
    %c0_i32 = arith.constant 0 : i32
    %c0_i32_0 = arith.constant 0 : i32
    %c0_i32_1 = arith.constant 0 : i32
    return %arg0, %c0_i32, %arg1, %c0_i32_0 : i32, i32, i32, i32
  }
  func.func @transform_1(%arg0: i32, %arg1: i32) -> (i32, i32, i32) {
    %c0_i32 = arith.constant 0 : i32
    %c0_i32_0 = arith.constant 0 : i32
    %c0_i32_1 = arith.constant 0 : i32
    %c0_i32_2 = arith.constant 0 : i32
    return %c0_i32, %c0_i32_0, %c0_i32_1 : i32, i32, i32
  }
  func.func @transform_2(%arg0: i32, %arg1: i32) -> (i32, i32, i32, i32) {
    %c0_i32 = arith.constant 0 : i32
    %c0_i32_0 = arith.constant 0 : i32
    %c0_i32_1 = arith.constant 0 : i32
    return %arg0, %c0_i32, %arg1, %c0_i32_0 : i32, i32, i32, i32
  }
}

</mosaic_0001>

<llo_original>
// kernel: tpu_custom_call.1
$region0: #{tpu_custom_call.1}
  #allocation0 [shape = 'u32[]', space=smem, size = 0x4, offset = 0x4, fixed_abs, tag = 'smem constant byte address 0x4 - core index']
  #allocation1 [shape = 'u32[144,128]{1,0:T(1,128)}', space=vmem, size = 0x12000, scoped, tag = 'internal scratch']
  %s0 = inlined_call_operand.hbm [shape: f32[2,8,2,128], index: 0, kind: input, shape index: {}]
  %s1 = inlined_call_operand.hbm [shape: f32[4,128,512], index: 1, kind: input, shape index: {}]
  %s2 = inlined_call_operand.hbm [shape: f32[2,2,2,512], index: 2, kind: output, shape index: {}]
  %s3 = sld [smem:[#allocation0]]
  $region49: #{tpu_custom_call.1} parent=0
    _
  %s5 = ssub.s32 1, %s3
  %s6 = scalar_select 0, %s5, %s3
  $region1: #{tpu_custom_call.1} parent=0
    #allocation2 [shape = 'u8[16384]{0}', space=vmem, size = 0x4000, scoped, tag = 'input window, operand 0']
    #allocation3 [shape = 's32[2]{0}', space=sflag, size = 0x8, scoped, tag = 'scoped memory for tpu_custom_call.1']
    #allocation4 [shape = 's32[2]{0}', space=sflag, size = 0x8, scoped, tag = 'scoped memory for tpu_custom_call.1']
    #allocation5 [shape = 'u8[1048576]{0}', space=vmem, size = 0x100000, scoped, tag = 'input window, operand 1, single buffered']
    #allocation6 [shape = 's32[1]{0}', space=sflag, size = 0x4, scoped, tag = 'scoped memory for tpu_custom_call.1']
    #allocation7 [shape = 'u8[16384]{0}', space=vmem, size = 0x4000, scoped, tag = 'output window, operand 0']
    %7 = vsyncpa [#allocation3], 0
    %s8 = scalar_lea.sflag [#allocation3], 1
    %9 = vsyncpa %s8, 0
    %10 = vsyncpa [#allocation6], 0
    %11 = vsyncpa [#allocation4], 0
    %s12 = scalar_lea.sflag [#allocation4], 1
    %13 = vsyncpa %s12, 0
    loop: start=0, step=1, limit=4
    $region2: #{tpu_custom_call.1} parent=1 // loop_pre_header
      _
    $region3: #{tpu_custom_call.1} parent=1 // loop_header
      %s15 = sphi 0, %s19
      %p16 = scmp.ge.s32.totalorder %s15, 4
      %s22 = sphi 0, %s34
      %s23 = sphi 0, %s30
      %s24 = sphi 0, %s22
      %s25 = sphi 0, %s23
      %s26 = sphi 0, %s24
      %s27 = sphi 0, %s25
      %s39 = sphi 0, %s41
      %s42 = sphi 0, %s39
      %s43 = sphi 0, %s42
      %s59 = sphi 0, %s43
      %s63 = sphi 0, %s63
      %s65 = sphi 0, %s63
      %s66 = sphi 0, %s65
      %s80 = sphi 0, %s66
      %s88 = sphi 0, %s90
      %s91 = sphi 0, %s88
      %s92 = sphi 0, %s91
      %s108 = sphi 0, %s92
    $region4: #{tpu_custom_call.1} parent=1 // loop_header_branch
      %18 = sbr.rel (%p16) target = $region8
    $region5: #{tpu_custom_call.1} parent=1 // loop_body
      %s20 = ssub.s32 %s15, 1
      %s21 = ssub.s32 %s15, 2
      %s28 = sadd.s32 1, %s23
      %p29 = scmp.ge.s32.totalorder %s28, 1
      %s30 = scalar_select %p29, 0, %s28
      %s31 = sadd.s32 1, %s22
      %s32 = scalar_select %p29, %s31, %s22
      %p33 = scmp.ge.s32.totalorder %s32, 2
      %s34 = scalar_select %p33, 0, %s32
      %s35 = ssub.s32 %s22, %s34
      %s36 = ssub.s32 %s23, %s30
      %s37 = sor.u32 %s35, %s36
      %p38 = scmp.eq.s32.totalorder %s37, 0
      %s40 = sadd.s32 %s39, 1
      %s41 = scalar_select %p38, %s39, %s40
      %p44 = pneg %p38
      %p45 = scmp.eq.s32.totalorder %s15, 1
      %p46 = por %p44, %p45
      %p47 = scmp.ne.s32.totalorder %s39, %s42
      %p48 = scmp.eq.s32.totalorder %s15, 0
      %p49 = por %p47, %p48
      %p50 = scmp.ne.s32.totalorder %s39, %s42
      %p51 = scmp.eq.s32.totalorder %s20, 1
      %p52 = por %p50, %p51
      %p53 = scmp.ne.s32.totalorder %s42, %s43
      %p54 = scmp.eq.s32.totalorder %s20, 0
      %p55 = por %p53, %p54
      %p56 = scmp.ne.s32.totalorder %s42, %s43
      %p57 = scmp.eq.s32.totalorder %s21, 1
      %p58 = por %p56, %p57
      %p60 = scmp.ne.s32.totalorder %s43, %s59
      %p61 = scmp.eq.s32.totalorder %s21, 0
      %p62 = por %p60, %p61
      %s64 = sadd.s32 %s63, 1
      %p67 = scmp.eq.s32.totalorder %s15, 1
      %p68 = scmp.ne.s32.totalorder %s63, %s65
      %p69 = scmp.eq.s32.totalorder %s15, 0
      %p70 = por %p68, %p69
      %p71 = scmp.ne.s32.totalorder %s63, %s65
      %p72 = scmp.eq.s32.totalorder %s20, 1
      %p73 = por %p71, %p72
      %p74 = scmp.ne.s32.totalorder %s65, %s66
      %p75 = scmp.eq.s32.totalorder %s20, 0
      %p76 = por %p74, %p75
      %p77 = scmp.ne.s32.totalorder %s65, %s66
      %p78 = scmp.eq.s32.totalorder %s21, 1
      %p79 = por %p77, %p78
      %p81 = scmp.ne.s32.totalorder %s66, %s80
      %p82 = scmp.eq.s32.totalorder %s21, 0
      %p83 = por %p81, %p82
      %s84 = ssub.s32 %s22, %s34
      %s85 = ssub.s32 %s23, %s30
      %s86 = sor.u32 %s84, %s85
      %p87 = scmp.eq.s32.totalorder %s86, 0
      %s89 = sadd.s32 %s88, 1
      %s90 = scalar_select %p87, %s88, %s89
      %p93 = pneg %p87
      %p94 = scmp.eq.s32.totalorder %s15, 1
      %p95 = por %p93, %p94
      %p96 = scmp.ne.s32.totalorder %s88, %s91
      %p97 = scmp.eq.s32.totalorder %s15, 0
      %p98 = por %p96, %p97
      %p99 = scmp.ne.s32.totalorder %s88, %s91
      %p100 = scmp.eq.s32.totalorder %s20, 1
      %p101 = por %p99, %p100
      %p102 = scmp.ne.s32.totalorder %s91, %s92
      %p103 = scmp.eq.s32.totalorder %s20, 0
      %p104 = por %p102, %p103
      %p105 = scmp.ne.s32.totalorder %s91, %s92
      %p106 = scmp.eq.s32.totalorder %s21, 1
      %p107 = por %p105, %p106
      %p109 = scmp.ne.s32.totalorder %s92, %s108
      %p110 = scmp.eq.s32.totalorder %s21, 0
      %p111 = por %p109, %p110
      %p112 = scmp.le.s32.totalorder 1, %s15
      %p113 = scmp.lt.s32.totalorder %s15, 3
      %p114 = pnand %p112, %p113
      %p115 = pneg %p114
      // Predicated region
      $region9: #{tpu_custom_call.1} parent=5 // pred_check
        _
      $region10: #{tpu_custom_call.1} parent=5 // pred_check_branch
        %117 = sbr.rel (%p114) target = $region12
      $region11: #{tpu_custom_call.1} parent=5 // pred_region
        %s118 = ssub.s32 %s15, 1
        // Predicated region
        $region13: #{tpu_custom_call.1} parent=11 // pred_check
          %p119 = pneg %p76
        $region14: #{tpu_custom_call.1} parent=11 // pred_check_branch
          %121 = sbr.rel (%p119) target = $region16
        $region15: #{tpu_custom_call.1} parent=11 // pred_region
          %s123 = ssub.s32 32768, 32768
          %124 = vsyncadd [#allocation6], %s123
          %s125 = sshll.u32 [#allocation5], 4
          %s126 = int_to_ptr.vmem [resolvable:$true] %s125
          %131 = dma.hbm_to_vmem [thread:$0]  %s1, 32768, %s126, [#allocation6], 512, 512, 32
        $region16: #{tpu_custom_call.1} parent=11 // pred_fallthru
          _
      $region12: #{tpu_custom_call.1} parent=5 // pred_fallthru
        _
      %p132 = scmp.lt.s32.totalorder %s15, 2
      // Predicated region
      $region17: #{tpu_custom_call.1} parent=5 // pred_check
        %p133 = pneg %p132
      $region18: #{tpu_custom_call.1} parent=5 // pred_check_branch
        %135 = sbr.rel (%p133) target = $region20
      $region19: #{tpu_custom_call.1} parent=5 // pred_region
        // Predicated region
        $region21: #{tpu_custom_call.1} parent=19 // pred_check
          %p136 = pneg %p49
        $region22: #{tpu_custom_call.1} parent=19 // pred_check_branch
          %138 = sbr.rel (%p136) target = $region24
        $region23: #{tpu_custom_call.1} parent=19 // pred_region
          %s139 = sand.u32 %s39, 1
          %s140 = scalar_lea.sflag [#allocation3], %s139
          %s141 = sand.u32 %s39, 1
          %s142 = smul.addr %s141, 16
          %s143 = scalar_lea.vmem [#allocation2], %s142
          %s145 = ssub.s32 256, 256
          %146 = vsyncadd %s140, %s145
          %s147 = smul.addr %s22, 8
          %s148 = sadd.s32 %s23, %s147
          %s149 = smul.addr %s148, 32
          %s150 = scalar_lea.hbm %s0, %s149
          %s151 = sshll.u32 %s143, 4
          %s152 = int_to_ptr.vmem [resolvable:$true] %s151
          %157 = dma.hbm_to_vmem [thread:$0]  %s150, 256, %s152, %s140, 32, 32, 2
        $region24: #{tpu_custom_call.1} parent=19 // pred_fallthru
          _
      $region20: #{tpu_custom_call.1} parent=5 // pred_fallthru
        _
      %p158 = scmp.le.s32.totalorder 1, %s15
      %p159 = scmp.lt.s32.totalorder %s15, 3
      %p160 = pnand %p158, %p159
      %p161 = pneg %p160
      // Predicated region
      $region25: #{tpu_custom_call.1} parent=5 // pred_check
        _
      $region26: #{tpu_custom_call.1} parent=5 // pred_check_branch
        %163 = sbr.rel (%p160) target = $region28
      $region27: #{tpu_custom_call.1} parent=5 // pred_region
        %s164 = ssub.s32 %s15, 1
        %s165 = sand.u32 %s42, 1
        %s166 = scalar_lea.sflag [#allocation3], %s165
        %s167 = sand.u32 %s42, 1
        %s168 = smul.addr %s167, 16
        %s169 = scalar_lea.vmem [#allocation2], %s168
        // Predicated region
        $region29: #{tpu_custom_call.1} parent=27 // pred_check
          %p170 = pneg %p55
        $region30: #{tpu_custom_call.1} parent=27 // pred_check_branch
          %172 = sbr.rel (%p170) target = $region32
        $region31: #{tpu_custom_call.1} parent=27 // pred_region
          %173 = dma.done %s166, 256
        $region32: #{tpu_custom_call.1} parent=27 // pred_fallthru
          _
        // Predicated region
        $region33: #{tpu_custom_call.1} parent=27 // pred_check
          %p174 = pneg %p76
        $region34: #{tpu_custom_call.1} parent=27 // pred_check_branch
          %176 = sbr.rel (%p174) target = $region36
        $region35: #{tpu_custom_call.1} parent=27 // pred_region
          %177 = dma.done [#allocation6], 32768
        $region36: #{tpu_custom_call.1} parent=27 // pred_fallthru
          _
        %s178 = sand.u32 %s42, 1
        %s179 = scalar_lea.sflag [#allocation3], %s178
        %s180 = sand.u32 %s42, 1
        %s181 = smul.addr %s180, 16
        %s182 = scalar_lea.vmem [#allocation2], %s181
        %p183 = pneg %p55
        %p184 = pneg %p52
        %p185 = pneg %p76
        %p186 = pneg %p73
        %p187 = pneg %p104
        %p188 = pneg %p101
        %s189 = sand.u32 %s91, 1
        %s190 = scalar_lea.sflag [#allocation4], %s189
        %s191 = sand.u32 %s91, 1
        %s192 = smul.addr %s191, 16
        %s193 = scalar_lea.vmem [#allocation7], %s192
        %v194 = vld [vmem:[%s169] sm:$0x3]
        %v195 = vld [vmem:[%s169 + $0x2] sm:$0x3]
        %s196 = scalar_lea.vmem %s169, 4 [#allocation2]
        %v197 = vld [vmem:[%s196] sm:$0x3]
        %v198 = vld [vmem:[%s196 + $0x2] sm:$0x3]
        %s199 = scalar_lea.vmem %s169, 8 [#allocation2]
        %v200 = vld [vmem:[%s199] sm:$0x3]
        %v201 = vld [vmem:[%s199 + $0x2] sm:$0x3]
        %s202 = scalar_lea.vmem %s169, 12 [#allocation2]
        %v203 = vld [vmem:[%s202] sm:$0x3]
        %v204 = vld [vmem:[%s202 + $0x2] sm:$0x3]
        %v213 = vcombine.low %v194, %v197
        %v214 = vcombine.low %v200, %v203
        %v216 = vunpack.c.l.s4 1983009808
        %v217 = vunpack.c.0.s8 %v216
        %v218 = vlaneseq
        %v219 = vshrl.u32 %v218, 7
        %v220 = vsub.s32 %v217, %v219
        %v221 = vrot.slane %v213, %v220
        %v223 = vunpack.c.l.s4 1983009808
        %v224 = vunpack.c.0.s8 %v223
        %v225 = vlaneseq
        %v226 = vshrl.u32 %v225, 7
        %v227 = vsub.s32 %v224, %v226
        %v228 = vrot.slane %v214, %v227
        %v229 = vcombine.low %v221, %v228
        %v230 = vcombine.low %v195, %v198
        %v231 = vcombine.low %v201, %v204
        %v233 = vunpack.c.l.s4 1983009808
        %v234 = vunpack.c.0.s8 %v233
        %v235 = vlaneseq
        %v236 = vshrl.u32 %v235, 7
        %v237 = vsub.s32 %v234, %v236
        %v238 = vrot.slane %v230, %v237
        %v240 = vunpack.c.l.s4 1983009808
        %v241 = vunpack.c.0.s8 %v240
        %v242 = vlaneseq
        %v243 = vshrl.u32 %v242, 7
        %v244 = vsub.s32 %v241, %v243
        %v245 = vrot.slane %v231, %v244
        %v246 = vcombine.low %v238, %v245
        %v247 = vld [vmem:[#allocation5] sm:$0xff]
        %v248 = vld [vmem:[#allocation5 + $0x8] sm:$0xff]
        %v249 = vld [vmem:[#allocation5 + $0x10] sm:$0xff]
        %v250 = vld [vmem:[#allocation5 + $0x18] sm:$0xff]
        %v251 = vld [vmem:[#allocation5 + $0x20] sm:$0xff]
        %v252 = vld [vmem:[#allocation5 + $0x28] sm:$0xff]
        %v253 = vld [vmem:[#allocation5 + $0x30] sm:$0xff]
        %v254 = vld [vmem:[#allocation5 + $0x38] sm:$0xff]
        %v255 = vld [vmem:[#allocation5 + $0x40] sm:$0xff]
        %v256 = vld [vmem:[#allocation5 + $0x48] sm:$0xff]
        %v257 = vld [vmem:[#allocation5 + $0x50] sm:$0xff]
        %v258 = vld [vmem:[#allocation5 + $0x58] sm:$0xff]
        %v259 = vld [vmem:[#allocation5 + $0x60] sm:$0xff]
        %v260 = vld [vmem:[#allocation5 + $0x68] sm:$0xff]
        %v261 = vld [vmem:[#allocation5 + $0x70] sm:$0xff]
        %v262 = vld [vmem:[#allocation5 + $0x78] sm:$0xff]
        %v263 = vld [vmem:[#allocation5 + $0x80] sm:$0xff]
        %v264 = vld [vmem:[#allocation5 + $0x88] sm:$0xff]
        %v265 = vld [vmem:[#allocation5 + $0x90] sm:$0xff]
        %v266 = vld [vmem:[#allocation5 + $0x98] sm:$0xff]
        %v267 = vld [vmem:[#allocation5 + $0xa0] sm:$0xff]
        %v268 = vld [vmem:[#allocation5 + $0xa8] sm:$0xff]
        %v269 = vld [vmem:[#allocation5 + $0xb0] sm:$0xff]
        %v270 = vld [vmem:[#allocation5 + $0xb8] sm:$0xff]
        %v271 = vld [vmem:[#allocation5 + $0xc0] sm:$0xff]
        %v272 = vld [vmem:[#allocation5 + $0xc8] sm:$0xff]
        %v273 = vld [vmem:[#allocation5 + $0xd0] sm:$0xff]
        %v274 = vld [vmem:[#allocation5 + $0xd8] sm:$0xff]
        %v275 = vld [vmem:[#allocation5 + $0xe0] sm:$0xff]
        %v276 = vld [vmem:[#allocation5 + $0xe8] sm:$0xff]
        %v277 = vld [vmem:[#allocation5 + $0xf0] sm:$0xff]
        %v278 = vld [vmem:[#allocation5 + $0xf8] sm:$0xff]
        %v279 = vld [vmem:[#allocation5 + $0x100] sm:$0xff]
        %v280 = vld [vmem:[#allocation5 + $0x108] sm:$0xff]
        %v281 = vld [vmem:[#allocation5 + $0x110] sm:$0xff]
        %v282 = vld [vmem:[#allocation5 + $0x118] sm:$0xff]
        %v283 = vld [vmem:[#allocation5 + $0x120] sm:$0xff]
        %v284 = vld [vmem:[#allocation5 + $0x128] sm:$0xff]
        %v285 = vld [vmem:[#allocation5 + $0x130] sm:$0xff]
        %v286 = vld [vmem:[#allocation5 + $0x138] sm:$0xff]
        %v287 = vld [vmem:[#allocation5 + $0x140] sm:$0xff]
        %v288 = vld [vmem:[#allocation5 + $0x148] sm:$0xff]
        %v289 = vld [vmem:[#allocation5 + $0x150] sm:$0xff]
        %v290 = vld [vmem:[#allocation5 + $0x158] sm:$0xff]
        %v291 = vld [vmem:[#allocation5 + $0x160] sm:$0xff]
        %v292 = vld [vmem:[#allocation5 + $0x168] sm:$0xff]
        %v293 = vld [vmem:[#allocation5 + $0x170] sm:$0xff]
        %v294 = vld [vmem:[#allocation5 + $0x178] sm:$0xff]
        %v295 = vld [vmem:[#allocation5 + $0x180] sm:$0xff]
        %v296 = vld [vmem:[#allocation5 + $0x188] sm:$0xff]
        %v297 = vld [vmem:[#allocation5 + $0x190] sm:$0xff]
        %v298 = vld [vmem:[#allocation5 + $0x198] sm:$0xff]
        %v299 = vld [vmem:[#allocation5 + $0x1a0] sm:$0xff]
        %v300 = vld [vmem:[#allocation5 + $0x1a8] sm:$0xff]
        %v301 = vld [vmem:[#allocation5 + $0x1b0] sm:$0xff]
        %v302 = vld [vmem:[#allocation5 + $0x1b8] sm:$0xff]
        %v303 = vld [vmem:[#allocation5 + $0x1c0] sm:$0xff]
        %v304 = vld [vmem:[#allocation5 + $0x1c8] sm:$0xff]
        %v305 = vld [vmem:[#allocation5 + $0x1d0] sm:$0xff]
        %v306 = vld [vmem:[#allocation5 + $0x1d8] sm:$0xff]
        %v307 = vld [vmem:[#allocation5 + $0x1e0] sm:$0xff]
        %v308 = vld [vmem:[#allocation5 + $0x1e8] sm:$0xff]
        %v309 = vld [vmem:[#allocation5 + $0x1f0] sm:$0xff]
        %v310 = vld [vmem:[#allocation5 + $0x1f8] sm:$0xff]
        %v311 = vld [vmem:[#allocation5 + $0x200] sm:$0xff]
        %v312 = vld [vmem:[#allocation5 + $0x208] sm:$0xff]
        %v313 = vld [vmem:[#allocation5 + $0x210] sm:$0xff]
        %v314 = vld [vmem:[#allocation5 + $0x218] sm:$0xff]
        %v315 = vld [vmem:[#allocation5 + $0x220] sm:$0xff]
        %v316 = vld [vmem:[#allocation5 + $0x228] sm:$0xff]
        %v317 = vld [vmem:[#allocation5 + $0x230] sm:$0xff]
        %v318 = vld [vmem:[#allocation5 + $0x238] sm:$0xff]
        %v319 = vld [vmem:[#allocation5 + $0x240] sm:$0xff]
        %v320 = vld [vmem:[#allocation5 + $0x248] sm:$0xff]
        %v321 = vld [vmem:[#allocation5 + $0x250] sm:$0xff]
        %v322 = vld [vmem:[#allocation5 + $0x258] sm:$0xff]
        %v323 = vld [vmem:[#allocation5 + $0x260] sm:$0xff]
        %v324 = vld [vmem:[#allocation5 + $0x268] sm:$0xff]
        %v325 = vld [vmem:[#allocation5 + $0x270] sm:$0xff]
        %v326 = vld [vmem:[#allocation5 + $0x278] sm:$0xff]
        %v327 = vld [vmem:[#allocation5 + $0x280] sm:$0xff]
        %v328 = vld [vmem:[#allocation5 + $0x288] sm:$0xff]
        %v329 = vld [vmem:[#allocation5 + $0x290] sm:$0xff]
        %v330 = vld [vmem:[#allocation5 + $0x298] sm:$0xff]
        %v331 = vld [vmem:[#allocation5 + $0x2a0] sm:$0xff]
        %v332 = vld [vmem:[#allocation5 + $0x2a8] sm:$0xff]
        %v333 = vld [vmem:[#allocation5 + $0x2b0] sm:$0xff]
        %v334 = vld [vmem:[#allocation5 + $0x2b8] sm:$0xff]
        %v335 = vld [vmem:[#allocation5 + $0x2c0] sm:$0xff]
        %v336 = vld [vmem:[#allocation5 + $0x2c8] sm:$0xff]
        %v337 = vld [vmem:[#allocation5 + $0x2d0] sm:$0xff]
        %v338 = vld [vmem:[#allocation5 + $0x2d8] sm:$0xff]
        %v339 = vld [vmem:[#allocation5 + $0x2e0] sm:$0xff]
        %v340 = vld [vmem:[#allocation5 + $0x2e8] sm:$0xff]
        %v341 = vld [vmem:[#allocation5 + $0x2f0] sm:$0xff]
        %v342 = vld [vmem:[#allocation5 + $0x2f8] sm:$0xff]
        %v343 = vld [vmem:[#allocation5 + $0x300] sm:$0xff]
        %v344 = vld [vmem:[#allocation5 + $0x308] sm:$0xff]
        %v345 = vld [vmem:[#allocation5 + $0x310] sm:$0xff]
        %v346 = vld [vmem:[#allocation5 + $0x318] sm:$0xff]
        %v347 = vld [vmem:[#allocation5 + $0x320] sm:$0xff]
        %v348 = vld [vmem:[#allocation5 + $0x328] sm:$0xff]
        %v349 = vld [vmem:[#allocation5 + $0x330] sm:$0xff]
        %v350 = vld [vmem:[#allocation5 + $0x338] sm:$0xff]
        %v351 = vld [vmem:[#allocation5 + $0x340] sm:$0xff]
        %v352 = vld [vmem:[#allocation5 + $0x348] sm:$0xff]
        %v353 = vld [vmem:[#allocation5 + $0x350] sm:$0xff]
        %v354 = vld [vmem:[#allocation5 + $0x358] sm:$0xff]
        %v355 = vld [vmem:[#allocation5 + $0x360] sm:$0xff]
        %v356 = vld [vmem:[#allocation5 + $0x368] sm:$0xff]
        %v357 = vld [vmem:[#allocation5 + $0x370] sm:$0xff]
        %v358 = vld [vmem:[#allocation5 + $0x378] sm:$0xff]
        %v359 = vld [vmem:[#allocation5 + $0x380] sm:$0xff]
        %v360 = vld [vmem:[#allocation5 + $0x388] sm:$0xff]
        %v361 = vld [vmem:[#allocation5 + $0x390] sm:$0xff]
        %v362 = vld [vmem:[#allocation5 + $0x398] sm:$0xff]
        %v363 = vld [vmem:[#allocation5 + $0x3a0] sm:$0xff]
        %v364 = vld [vmem:[#allocation5 + $0x3a8] sm:$0xff]
        %v365 = vld [vmem:[#allocation5 + $0x3b0] sm:$0xff]
        %v366 = vld [vmem:[#allocation5 + $0x3b8] sm:$0xff]
        %v367 = vld [vmem:[#allocation5 + $0x3c0] sm:$0xff]
        %v368 = vld [vmem:[#allocation5 + $0x3c8] sm:$0xff]
        %v369 = vld [vmem:[#allocation5 + $0x3d0] sm:$0xff]
        %v370 = vld [vmem:[#allocation5 + $0x3d8] sm:$0xff]
        %v371 = vld [vmem:[#allocation5 + $0x3e0] sm:$0xff]
        %v372 = vld [vmem:[#allocation5 + $0x3e8] sm:$0xff]
        %v373 = vld [vmem:[#allocation5 + $0x3f0] sm:$0xff]
        %v374 = vld [vmem:[#allocation5 + $0x3f8] sm:$0xff]
        %v375 = vld [vmem:[#allocation5 + $0x400] sm:$0xff]
        %v376 = vld [vmem:[#allocation5 + $0x408] sm:$0xff]
        %v377 = vld [vmem:[#allocation5 + $0x410] sm:$0xff]
        %v378 = vld [vmem:[#allocation5 + $0x418] sm:$0xff]
        %v379 = vld [vmem:[#allocation5 + $0x420] sm:$0xff]
        %v380 = vld [vmem:[#allocation5 + $0x428] sm:$0xff]
        %v381 = vld [vmem:[#allocation5 + $0x430] sm:$0xff]
        %v382 = vld [vmem:[#allocation5 + $0x438] sm:$0xff]
        %v383 = vld [vmem:[#allocation5 + $0x440] sm:$0xff]
        %v384 = vld [vmem:[#allocation5 + $0x448] sm:$0xff]
        %v385 = vld [vmem:[#allocation5 + $0x450] sm:$0xff]
        %v386 = vld [vmem:[#allocation5 + $0x458] sm:$0xff]
        %v387 = vld [vmem:[#allocation5 + $0x460] sm:$0xff]
        %v388 = vld [vmem:[#allocation5 + $0x468] sm:$0xff]
        %v389 = vld [vmem:[#allocation5 + $0x470] sm:$0xff]
        %v390 = vld [vmem:[#allocation5 + $0x478] sm:$0xff]
        %v391 = vld [vmem:[#allocation5 + $0x480] sm:$0xff]
        %v392 = vld [vmem:[#allocation5 + $0x488] sm:$0xff]
        %v393 = vld [vmem:[#allocation5 + $0x490] sm:$0xff]
        %v394 = vld [vmem:[#allocation5 + $0x498] sm:$0xff]
        %v395 = vld [vmem:[#allocation5 + $0x4a0] sm:$0xff]
        %v396 = vld [vmem:[#allocation5 + $0x4a8] sm:$0xff]
        %v397 = vld [vmem:[#allocation5 + $0x4b0] sm:$0xff]
        %v398 = vld [vmem:[#allocation5 + $0x4b8] sm:$0xff]
        %v399 = vld [vmem:[#allocation5 + $0x4c0] sm:$0xff]
        %v400 = vld [vmem:[#allocation5 + $0x4c8] sm:$0xff]
        %v401 = vld [vmem:[#allocation5 + $0x4d0] sm:$0xff]
        %v402 = vld [vmem:[#allocation5 + $0x4d8] sm:$0xff]
        %v403 = vld [vmem:[#allocation5 + $0x4e0] sm:$0xff]
        %v404 = vld [vmem:[#allocation5 + $0x4e8] sm:$0xff]
        %v405 = vld [vmem:[#allocation5 + $0x4f0] sm:$0xff]
        %v406 = vld [vmem:[#allocation5 + $0x4f8] sm:$0xff]
        %v407 = vld [vmem:[#allocation5 + $0x500] sm:$0xff]
        %v408 = vld [vmem:[#allocation5 + $0x508] sm:$0xff]
        %v409 = vld [vmem:[#allocation5 + $0x510] sm:$0xff]
        %v410 = vld [vmem:[#allocation5 + $0x518] sm:$0xff]
        %v411 = vld [vmem:[#allocation5 + $0x520] sm:$0xff]
        %v412 = vld [vmem:[#allocation5 + $0x528] sm:$0xff]
        %v413 = vld [vmem:[#allocation5 + $0x530] sm:$0xff]
        %v414 = vld [vmem:[#allocation5 + $0x538] sm:$0xff]
        %v415 = vld [vmem:[#allocation5 + $0x540] sm:$0xff]
        %v416 = vld [vmem:[#allocation5 + $0x548] sm:$0xff]
        %v417 = vld [vmem:[#allocation5 + $0x550] sm:$0xff]
        %v418 = vld [vmem:[#allocation5 + $0x558] sm:$0xff]
        %v419 = vld [vmem:[#allocation5 + $0x560] sm:$0xff]
        %v420 = vld [vmem:[#allocation5 + $0x568] sm:$0xff]
        %v421 = vld [vmem:[#allocation5 + $0x570] sm:$0xff]
        %v422 = vld [vmem:[#allocation5 + $0x578] sm:$0xff]
        %v423 = vld [vmem:[#allocation5 + $0x580] sm:$0xff]
        %v424 = vld [vmem:[#allocation5 + $0x588] sm:$0xff]
        %v425 = vld [vmem:[#allocation5 + $0x590] sm:$0xff]
        %v426 = vld [vmem:[#allocation5 + $0x598] sm:$0xff]
        %v427 = vld [vmem:[#allocation5 + $0x5a0] sm:$0xff]
        %v428 = vld [vmem:[#allocation5 + $0x5a8] sm:$0xff]
        %v429 = vld [vmem:[#allocation5 + $0x5b0] sm:$0xff]
        %v430 = vld [vmem:[#allocation5 + $0x5b8] sm:$0xff]
        %v431 = vld [vmem:[#allocation5 + $0x5c0] sm:$0xff]
        %v432 = vld [vmem:[#allocation5 + $0x5c8] sm:$0xff]
        %v433 = vld [vmem:[#allocation5 + $0x5d0] sm:$0xff]
        %v434 = vld [vmem:[#allocation5 + $0x5d8] sm:$0xff]
        %v435 = vld [vmem:[#allocation5 + $0x5e0] sm:$0xff]
        %v436 = vld [vmem:[#allocation5 + $0x5e8] sm:$0xff]
        %v437 = vld [vmem:[#allocation5 + $0x5f0] sm:$0xff]
        %v438 = vld [vmem:[#allocation5 + $0x5f8] sm:$0xff]
        %v439 = vld [vmem:[#allocation5 + $0x600] sm:$0xff]
        %v440 = vld [vmem:[#allocation5 + $0x608] sm:$0xff]
        %v441 = vld [vmem:[#allocation5 + $0x610] sm:$0xff]
        %v442 = vld [vmem:[#allocation5 + $0x618] sm:$0xff]
        %v443 = vld [vmem:[#allocation5 + $0x620] sm:$0xff]
        %v444 = vld [vmem:[#allocation5 + $0x628] sm:$0xff]
        %v445 = vld [vmem:[#allocation5 + $0x630] sm:$0xff]
        %v446 = vld [vmem:[#allocation5 + $0x638] sm:$0xff]
        %v447 = vld [vmem:[#allocation5 + $0x640] sm:$0xff]
        %v448 = vld [vmem:[#allocation5 + $0x648] sm:$0xff]
        %v449 = vld [vmem:[#allocation5 + $0x650] sm:$0xff]
        %v450 = vld [vmem:[#allocation5 + $0x658] sm:$0xff]
        %v451 = vld [vmem:[#allocation5 + $0x660] sm:$0xff]
        %v452 = vld [vmem:[#allocation5 + $0x668] sm:$0xff]
        %v453 = vld [vmem:[#allocation5 + $0x670] sm:$0xff]
        %v454 = vld [vmem:[#allocation5 + $0x678] sm:$0xff]
        %v455 = vld [vmem:[#allocation5 + $0x680] sm:$0xff]
        %v456 = vld [vmem:[#allocation5 + $0x688] sm:$0xff]
        %v457 = vld [vmem:[#allocation5 + $0x690] sm:$0xff]
        %v458 = vld [vmem:[#allocation5 + $0x698] sm:$0xff]
        %v459 = vld [vmem:[#allocation5 + $0x6a0] sm:$0xff]
        %v460 = vld [vmem:[#allocation5 + $0x6a8] sm:$0xff]
        %v461 = vld [vmem:[#allocation5 + $0x6b0] sm:$0xff]
        %v462 = vld [vmem:[#allocation5 + $0x6b8] sm:$0xff]
        %v463 = vld [vmem:[#allocation5 + $0x6c0] sm:$0xff]
        %v464 = vld [vmem:[#allocation5 + $0x6c8] sm:$0xff]
        %v465 = vld [vmem:[#allocation5 + $0x6d0] sm:$0xff]
        %v466 = vld [vmem:[#allocation5 + $0x6d8] sm:$0xff]
        %v467 = vld [vmem:[#allocation5 + $0x6e0] sm:$0xff]
        %v468 = vld [vmem:[#allocation5 + $0x6e8] sm:$0xff]
        %v469 = vld [vmem:[#allocation5 + $0x6f0] sm:$0xff]
        %v470 = vld [vmem:[#allocation5 + $0x6f8] sm:$0xff]
        %v471 = vld [vmem:[#allocation5 + $0x700] sm:$0xff]
        %v472 = vld [vmem:[#allocation5 + $0x708] sm:$0xff]
        %v473 = vld [vmem:[#allocation5 + $0x710] sm:$0xff]
        %v474 = vld [vmem:[#allocation5 + $0x718] sm:$0xff]
        %v475 = vld [vmem:[#allocation5 + $0x720] sm:$0xff]
        %v476 = vld [vmem:[#allocation5 + $0x728] sm:$0xff]
        %v477 = vld [vmem:[#allocation5 + $0x730] sm:$0xff]
        %v478 = vld [vmem:[#allocation5 + $0x738] sm:$0xff]
        %v479 = vld [vmem:[#allocation5 + $0x740] sm:$0xff]
        %v480 = vld [vmem:[#allocation5 + $0x748] sm:$0xff]
        %v481 = vld [vmem:[#allocation5 + $0x750] sm:$0xff]
        %v482 = vld [vmem:[#allocation5 + $0x758] sm:$0xff]
        %v483 = vld [vmem:[#allocation5 + $0x760] sm:$0xff]
        %v484 = vld [vmem:[#allocation5 + $0x768] sm:$0xff]
        %v485 = vld [vmem:[#allocation5 + $0x770] sm:$0xff]
        %v486 = vld [vmem:[#allocation5 + $0x778] sm:$0xff]
        %v487 = vld [vmem:[#allocation5 + $0x780] sm:$0xff]
        %v488 = vld [vmem:[#allocation5 + $0x788] sm:$0xff]
        %v489 = vld [vmem:[#allocation5 + $0x790] sm:$0xff]
        %v490 = vld [vmem:[#allocation5 + $0x798] sm:$0xff]
        %v491 = vld [vmem:[#allocation5 + $0x7a0] sm:$0xff]
        %v492 = vld [vmem:[#allocation5 + $0x7a8] sm:$0xff]
        %v493 = vld [vmem:[#allocation5 + $0x7b0] sm:$0xff]
        %v494 = vld [vmem:[#allocation5 + $0x7b8] sm:$0xff]
        %v495 = vld [vmem:[#allocation5 + $0x7c0] sm:$0xff]
        %v496 = vld [vmem:[#allocation5 + $0x7c8] sm:$0xff]
        %v497 = vld [vmem:[#allocation5 + $0x7d0] sm:$0xff]
        %v498 = vld [vmem:[#allocation5 + $0x7d8] sm:$0xff]
        %v499 = vld [vmem:[#allocation5 + $0x7e0] sm:$0xff]
        %v500 = vld [vmem:[#allocation5 + $0x7e8] sm:$0xff]
        %v501 = vld [vmem:[#allocation5 + $0x7f0] sm:$0xff]
        %v502 = vld [vmem:[#allocation5 + $0x7f8] sm:$0xff]
        %v503 = vcombine.low %v229, %v246
        %v504 = vcombine.high %v229, %v246
        %v506 = vunpack.c.l.s4 1983009808
        %v507 = vunpack.c.0.s8 %v506
        %v508 = vlaneseq
        %v509 = vshrl.u32 %v508, 7
        %v510 = vsub.s32 %v507, %v509
        %v511 = vrot.slane %v503, %v510
        %v513 = vunpack.c.l.s4 1983009808
        %v514 = vunpack.c.0.s8 %v513
        %v515 = vlaneseq
        %v516 = vshrl.u32 %v515, 7
        %v517 = vsub.s32 %v514, %v516
        %v518 = vrot.slane %v504, %v517
        %v519 = vcombine.high %v511, %v511
        %v520 = vcombine.high %v518, %v518
        %525 = vmatprep.subr.mxu0 %v248
        %526 = vmatpush1.msra.mxu0 %v247
        %527 = vmatprep.subr.mxu0 %v252
        %528 = vmatpush1.msra.mxu0 %v251
        %529 = vmatprep.subr.mxu0 %v256
        %530 = vmatpush1.msra.mxu0 %v255
        %531 = vmatprep.subr.mxu0 %v260
        %532 = vmatpush1.msra.mxu0 %v259
        %533 = vmatprep.subr.mxu0 %v264
        %534 = vmatpush1.msra.mxu0 %v263
        %535 = vmatprep.subr.mxu0 %v268
        %536 = vmatpush1.msra.mxu0 %v267
        %537 = vmatprep.subr.mxu0 %v272
        %538 = vmatpush1.msra.mxu0 %v271
        %539 = vmatprep.subr.mxu0 %v276
        %540 = vmatpush1.msra.mxu0 %v275
        %541 = vmatprep.subr.mxu0 %v280
        %542 = vmatpush1.msra.mxu0 %v279
        %543 = vmatprep.subr.mxu0 %v284
        %544 = vmatpush1.msra.mxu0 %v283
        %545 = vmatprep.subr.mxu0 %v288
        %546 = vmatpush1.msra.mxu0 %v287
        %547 = vmatprep.subr.mxu0 %v292
        %548 = vmatpush1.msra.mxu0 %v291
        %549 = vmatprep.subr.mxu0 %v296
        %550 = vmatpush1.msra.mxu0 %v295
        %551 = vmatprep.subr.mxu0 %v300
        %552 = vmatpush1.msra.mxu0 %v299
        %553 = vmatprep.subr.mxu0 %v304
        %554 = vmatpush1.msra.mxu0 %v303
        %555 = vmatprep.subr.mxu0 %v308
        %556 = vmatpush1.msra.mxu0 %v307
        %557 = vmatprep.subr.mxu0 %v312
        %558 = vmatpush1.msra.mxu0 %v311
        %559 = vmatprep.subr.mxu0 %v316
        %560 = vmatpush1.msra.mxu0 %v315
        %561 = vmatprep.subr.mxu0 %v320
        %562 = vmatpush1.msra.mxu0 %v319
        %563 = vmatprep.subr.mxu0 %v324
        %564 = vmatpush1.msra.mxu0 %v323
        %565 = vmatprep.subr.mxu0 %v328
        %566 = vmatpush1.msra.mxu0 %v327
        %567 = vmatprep.subr.mxu0 %v332
        %568 = vmatpush1.msra.mxu0 %v331
        %569 = vmatprep.subr.mxu0 %v336
        %570 = vmatpush1.msra.mxu0 %v335
        %571 = vmatprep.subr.mxu0 %v340
        %572 = vmatpush1.msra.mxu0 %v339
        %573 = vmatprep.subr.mxu0 %v344
        %574 = vmatpush1.msra.mxu0 %v343
        %575 = vmatprep.subr.mxu0 %v348
        %576 = vmatpush1.msra.mxu0 %v347
        %577 = vmatprep.subr.mxu0 %v352
        %578 = vmatpush1.msra.mxu0 %v351
        %579 = vmatprep.subr.mxu0 %v356
        %580 = vmatpush1.msra.mxu0 %v355
        %581 = vmatprep.subr.mxu0 %v360
        %582 = vmatpush1.msra.mxu0 %v359
        %583 = vmatprep.subr.mxu0 %v364
        %584 = vmatpush1.msra.mxu0 %v363
        %585 = vmatprep.subr.mxu0 %v368
        %586 = vmatpush1.msra.mxu0 %v367
        %587 = vmatprep.subr.mxu0 %v372
        %588 = vmatpush1.msra.mxu0 %v371
        %589 = vmatprep.mubr.f32.mxu0 %v519
        %590 = vmatmul.mubr.f32.gmra.mrb[0].mxu0 %v511
        %v591 = vpop.f32.mrb[0].mxu0
        %v592 = vadd.f32 0.0, %v591
        %v593 = vpop.f32.mrb[0].mxu0
        %v594 = vadd.f32 0.0, %v593
        %595 = vdwg.mxu0
        %596 = vmatprep.subr.mxu0 %v376
        %597 = vmatpush1.msra.mxu0 %v375
        %598 = vmatprep.subr.mxu0 %v380
        %599 = vmatpush1.msra.mxu0 %v379
        %600 = vmatprep.subr.mxu0 %v384
        %601 = vmatpush1.msra.mxu0 %v383
        %602 = vmatprep.subr.mxu0 %v388
        %603 = vmatpush1.msra.mxu0 %v387
        %604 = vmatprep.subr.mxu0 %v392
        %605 = vmatpush1.msra.mxu0 %v391
        %606 = vmatprep.subr.mxu0 %v396
        %607 = vmatpush1.msra.mxu0 %v395
        %608 = vmatprep.subr.mxu0 %v400
        %609 = vmatpush1.msra.mxu0 %v399
        %610 = vmatprep.subr.mxu0 %v404
        %611 = vmatpush1.msra.mxu0 %v403
        %612 = vmatprep.subr.mxu0 %v408
        %613 = vmatpush1.msra.mxu0 %v407
        %614 = vmatprep.subr.mxu0 %v412
        %615 = vmatpush1.msra.mxu0 %v411
        %616 = vmatprep.subr.mxu0 %v416
        %617 = vmatpush1.msra.mxu0 %v415
        %618 = vmatprep.subr.mxu0 %v420
        %619 = vmatpush1.msra.mxu0 %v419
        %620 = vmatprep.subr.mxu0 %v424
        %621 = vmatpush1.msra.mxu0 %v423
        %622 = vmatprep.subr.mxu0 %v428
        %623 = vmatpush1.msra.mxu0 %v427
        %624 = vmatprep.subr.mxu0 %v432
        %625 = vmatpush1.msra.mxu0 %v431
        %626 = vmatprep.subr.mxu0 %v436
        %627 = vmatpush1.msra.mxu0 %v435
        %628 = vmatprep.subr.mxu0 %v440
        %629 = vmatpush1.msra.mxu0 %v439
        %630 = vmatprep.subr.mxu0 %v444
        %631 = vmatpush1.msra.mxu0 %v443
        %632 = vmatprep.subr.mxu0 %v448
        %633 = vmatpush1.msra.mxu0 %v447
        %634 = vmatprep.subr.mxu0 %v452
        %635 = vmatpush1.msra.mxu0 %v451
        %636 = vmatprep.subr.mxu0 %v456
        %637 = vmatpush1.msra.mxu0 %v455
        %638 = vmatprep.subr.mxu0 %v460
        %639 = vmatpush1.msra.mxu0 %v459
        %640 = vmatprep.subr.mxu0 %v464
        %641 = vmatpush1.msra.mxu0 %v463
        %642 = vmatprep.subr.mxu0 %v468
        %643 = vmatpush1.msra.mxu0 %v467
        %644 = vmatprep.subr.mxu0 %v472
        %645 = vmatpush1.msra.mxu0 %v471
        %646 = vmatprep.subr.mxu0 %v476
        %647 = vmatpush1.msra.mxu0 %v475
        %648 = vmatprep.subr.mxu0 %v480
        %649 = vmatpush1.msra.mxu0 %v479
        %650 = vmatprep.subr.mxu0 %v484
        %651 = vmatpush1.msra.mxu0 %v483
        %652 = vmatprep.subr.mxu0 %v488
        %653 = vmatpush1.msra.mxu0 %v487
        %654 = vmatprep.subr.mxu0 %v492
        %655 = vmatpush1.msra.mxu0 %v491
        %656 = vmatprep.subr.mxu0 %v496
        %657 = vmatpush1.msra.mxu0 %v495
        %658 = vmatprep.subr.mxu0 %v500
        %659 = vmatpush1.msra.mxu0 %v499
        %660 = vmatprep.mubr.f32.mxu0 %v520
        %661 = vmatmul.mubr.f32.gmra.mrb[0].mxu0 %v518
        %v662 = vpop.f32.mrb[0].mxu0
        %v663 = vadd.f32 %v592, %v662
        %v664 = vpop.f32.mrb[0].mxu0
        %v665 = vadd.f32 %v594, %v664
        %666 = vdwg.mxu0
        %667 = vmatprep.subr.mxu0 %v250
        %668 = vmatpush1.msra.mxu0 %v249
        %669 = vmatprep.subr.mxu0 %v254
        %670 = vmatpush1.msra.mxu0 %v253
        %671 = vmatprep.subr.mxu0 %v258
        %672 = vmatpush1.msra.mxu0 %v257
        %673 = vmatprep.subr.mxu0 %v262
        %674 = vmatpush1.msra.mxu0 %v261
        %675 = vmatprep.subr.mxu0 %v266
        %676 = vmatpush1.msra.mxu0 %v265
        %677 = vmatprep.subr.mxu0 %v270
        %678 = vmatpush1.msra.mxu0 %v269
        %679 = vmatprep.subr.mxu0 %v274
        %680 = vmatpush1.msra.mxu0 %v273
        %681 = vmatprep.subr.mxu0 %v278
        %682 = vmatpush1.msra.mxu0 %v277
        %683 = vmatprep.subr.mxu0 %v282
        %684 = vmatpush1.msra.mxu0 %v281
        %685 = vmatprep.subr.mxu0 %v286
        %686 = vmatpush1.msra.mxu0 %v285
        %687 = vmatprep.subr.mxu0 %v290
        %688 = vmatpush1.msra.mxu0 %v289
        %689 = vmatprep.subr.mxu0 %v294
        %690 = vmatpush1.msra.mxu0 %v293
        %691 = vmatprep.subr.mxu0 %v298
        %692 = vmatpush1.msra.mxu0 %v297
        %693 = vmatprep.subr.mxu0 %v302
        %694 = vmatpush1.msra.mxu0 %v301
        %695 = vmatprep.subr.mxu0 %v306
        %696 = vmatpush1.msra.mxu0 %v305
        %697 = vmatprep.subr.mxu0 %v310
        %698 = vmatpush1.msra.mxu0 %v309
        %699 = vmatprep.subr.mxu0 %v314
        %700 = vmatpush1.msra.mxu0 %v313
        %701 = vmatprep.subr.mxu0 %v318
        %702 = vmatpush1.msra.mxu0 %v317
        %703 = vmatprep.subr.mxu0 %v322
        %704 = vmatpush1.msra.mxu0 %v321
        %705 = vmatprep.subr.mxu0 %v326
        %706 = vmatpush1.msra.mxu0 %v325
        %707 = vmatprep.subr.mxu0 %v330
        %708 = vmatpush1.msra.mxu0 %v329
        %709 = vmatprep.subr.mxu0 %v334
        %710 = vmatpush1.msra.mxu0 %v333
        %711 = vmatprep.subr.mxu0 %v338
        %712 = vmatpush1.msra.mxu0 %v337
        %713 = vmatprep.subr.mxu0 %v342
        %714 = vmatpush1.msra.mxu0 %v341
        %715 = vmatprep.subr.mxu0 %v346
        %716 = vmatpush1.msra.mxu0 %v345
        %717 = vmatprep.subr.mxu0 %v350
        %718 = vmatpush1.msra.mxu0 %v349
        %719 = vmatprep.subr.mxu0 %v354
        %720 = vmatpush1.msra.mxu0 %v353
        %721 = vmatprep.subr.mxu0 %v358
        %722 = vmatpush1.msra.mxu0 %v357
        %723 = vmatprep.subr.mxu0 %v362
        %724 = vmatpush1.msra.mxu0 %v361
        %725 = vmatprep.subr.mxu0 %v366
        %726 = vmatpush1.msra.mxu0 %v365
        %727 = vmatprep.subr.mxu0 %v370
        %728 = vmatpush1.msra.mxu0 %v369
        %729 = vmatprep.subr.mxu0 %v374
        %730 = vmatpush1.msra.mxu0 %v373
        %731 = vmatprep.mubr.f32.mxu0 %v519
        %732 = vmatmul.mubr.f32.gmra.mrb[0].mxu0 %v511
        %v733 = vpop.f32.mrb[0].mxu0
        %v734 = vadd.f32 0.0, %v733
        %v735 = vpop.f32.mrb[0].mxu0
        %v736 = vadd.f32 0.0, %v735
        %737 = vdwg.mxu0
        %738 = vmatprep.subr.mxu0 %v378
        %739 = vmatpush1.msra.mxu0 %v377
        %740 = vmatprep.subr.mxu0 %v382
        %741 = vmatpush1.msra.mxu0 %v381
        %742 = vmatprep.subr.mxu0 %v386
        %743 = vmatpush1.msra.mxu0 %v385
        %744 = vmatprep.subr.mxu0 %v390
        %745 = vmatpush1.msra.mxu0 %v389
        %746 = vmatprep.subr.mxu0 %v394
        %747 = vmatpush1.msra.mxu0 %v393
        %748 = vmatprep.subr.mxu0 %v398
        %749 = vmatpush1.msra.mxu0 %v397
        %750 = vmatprep.subr.mxu0 %v402
        %751 = vmatpush1.msra.mxu0 %v401
        %752 = vmatprep.subr.mxu0 %v406
        %753 = vmatpush1.msra.mxu0 %v405
        %754 = vmatprep.subr.mxu0 %v410
        %755 = vmatpush1.msra.mxu0 %v409
        %756 = vmatprep.subr.mxu0 %v414
        %757 = vmatpush1.msra.mxu0 %v413
        %758 = vmatprep.subr.mxu0 %v418
        %759 = vmatpush1.msra.mxu0 %v417
        %760 = vmatprep.subr.mxu0 %v422
        %761 = vmatpush1.msra.mxu0 %v421
        %762 = vmatprep.subr.mxu0 %v426
        %763 = vmatpush1.msra.mxu0 %v425
        %764 = vmatprep.subr.mxu0 %v430
        %765 = vmatpush1.msra.mxu0 %v429
        %766 = vmatprep.subr.mxu0 %v434
        %767 = vmatpush1.msra.mxu0 %v433
        %768 = vmatprep.subr.mxu0 %v438
        %769 = vmatpush1.msra.mxu0 %v437
        %770 = vmatprep.subr.mxu0 %v442
        %771 = vmatpush1.msra.mxu0 %v441
        %772 = vmatprep.subr.mxu0 %v446
        %773 = vmatpush1.msra.mxu0 %v445
        %774 = vmatprep.subr.mxu0 %v450
        %775 = vmatpush1.msra.mxu0 %v449
        %776 = vmatprep.subr.mxu0 %v454
        %777 = vmatpush1.msra.mxu0 %v453
        %778 = vmatprep.subr.mxu0 %v458
        %779 = vmatpush1.msra.mxu0 %v457
        %780 = vmatprep.subr.mxu0 %v462
        %781 = vmatpush1.msra.mxu0 %v461
        %782 = vmatprep.subr.mxu0 %v466
        %783 = vmatpush1.msra.mxu0 %v465
        %784 = vmatprep.subr.mxu0 %v470
        %785 = vmatpush1.msra.mxu0 %v469
        %786 = vmatprep.subr.mxu0 %v474
        %787 = vmatpush1.msra.mxu0 %v473
        %788 = vmatprep.subr.mxu0 %v478
        %789 = vmatpush1.msra.mxu0 %v477
        %790 = vmatprep.subr.mxu0 %v482
        %791 = vmatpush1.msra.mxu0 %v481
        %792 = vmatprep.subr.mxu0 %v486
        %793 = vmatpush1.msra.mxu0 %v485
        %794 = vmatprep.subr.mxu0 %v490
        %795 = vmatpush1.msra.mxu0 %v489
        %796 = vmatprep.subr.mxu0 %v494
        %797 = vmatpush1.msra.mxu0 %v493
        %798 = vmatprep.subr.mxu0 %v498
        %799 = vmatpush1.msra.mxu0 %v497
        %800 = vmatprep.subr.mxu0 %v502
        %801 = vmatpush1.msra.mxu0 %v501
        %802 = vmatprep.mubr.f32.mxu0 %v520
        %803 = vmatmul.mubr.f32.gmra.mrb[0].mxu0 %v518
        %v804 = vpop.f32.mrb[0].mxu0
        %v805 = vadd.f32 %v734, %v804
        %v806 = vpop.f32.mrb[0].mxu0
        %v807 = vadd.f32 %v736, %v806
        %808 = vdwg.mxu0
        %v813 = vcombine.low %v663, %v665
        %v814 = vcombine.low %v805, %v807
        %v816 = vunpack.c.l.s4 1983009808
        %v817 = vunpack.c.0.s8 %v816
        %v818 = vlaneseq
        %v819 = vshrl.u32 %v818, 7
        %v820 = vsub.s32 %v817, %v819
        %v821 = vrot.slane %v813, %v820
        %v823 = vunpack.c.l.s4 1983009808
        %v824 = vunpack.c.0.s8 %v823
        %v825 = vlaneseq
        %v826 = vshrl.u32 %v825, 7
        %v827 = vsub.s32 %v824, %v826
        %v828 = vrot.slane %v814, %v827
        %v829 = vcombine.low %v821, %v828
        %v830 = vcombine.high %v821, %v828
        %833 = vst [vmem:[%s193] sm:$0xff] %v829
        %834 = vst [vmem:[%s193 + $0x8] sm:$0xff] %v830
        %s835 = sand.u32 %s91, 1
        %s836 = scalar_lea.sflag [#allocation4], %s835
        %s837 = sand.u32 %s91, 1
        %s838 = smul.addr %s837, 16
        %s839 = scalar_lea.vmem [#allocation7], %s838
        // Predicated region
        $region37: #{tpu_custom_call.1} parent=27 // pred_check
          %p840 = pneg %p101
        $region38: #{tpu_custom_call.1} parent=27 // pred_check_branch
          %842 = sbr.rel (%p840) target = $region40
        $region39: #{tpu_custom_call.1} parent=27 // pred_region
          %s844 = ssub.s32 256, 256
          %845 = vsyncadd %s836, %s844
          %s846 = smul.addr %s25, 4
          %s847 = smul.addr %s24, 8
          %s848 = sadd.s32 %s846, %s847
          %s849 = smul.addr %s848, 32
          %s850 = scalar_lea.hbm %s2, %s849
          %s851 = sshll.u32 %s839, 4
          %s852 = int_to_ptr.vmem [resolvable:$true] %s851
          %857 = dma.vmem_to_hbm [thread:$0]  %s852, 256, %s850, %s836, 128, 128, 8
        $region40: #{tpu_custom_call.1} parent=27 // pred_fallthru
          _
      $region28: #{tpu_custom_call.1} parent=5 // pred_fallthru
        _
      %p858 = scmp.le.s32.totalorder 2, %s15
      // Predicated region
      $region41: #{tpu_custom_call.1} parent=5 // pred_check
        %p859 = pneg %p858
      $region42: #{tpu_custom_call.1} parent=5 // pred_check_branch
        %861 = sbr.rel (%p859) target = $region44
      $region43: #{tpu_custom_call.1} parent=5 // pred_region
        %s862 = ssub.s32 %s15, 2
        // Predicated region
        $region45: #{tpu_custom_call.1} parent=43 // pred_check
          %p863 = pneg %p107
        $region46: #{tpu_custom_call.1} parent=43 // pred_check_branch
          %865 = sbr.rel (%p863) target = $region48
        $region47: #{tpu_custom_call.1} parent=43 // pred_region
          %s866 = sand.u32 %s92, 1
          %s867 = scalar_lea.sflag [#allocation4], %s866
          %s868 = sand.u32 %s92, 1
          %s869 = smul.addr %s868, 16
          %s870 = scalar_lea.vmem [#allocation7], %s869
          %871 = dma.done %s867, 256
        $region48: #{tpu_custom_call.1} parent=43 // pred_fallthru
          _
      $region44: #{tpu_custom_call.1} parent=5 // pred_fallthru
        _
    $region6: #{tpu_custom_call.1} parent=1 // loop_footer
      %s19 = sadd.s32 1, %s15
    $region7: #{tpu_custom_call.1} parent=1 // loop_footer_branch
      %14 = sbr.rel target = $region3
    $region8: #{tpu_custom_call.1} parent=1 // loop_exit
      _
    %872 = vsyncpa [#allocation3], 1
    %s873 = scalar_lea.sflag [#allocation3], 1
    %874 = vsyncpa %s873, 1
    %875 = vsyncpa [#allocation6], 1
    %876 = vsyncpa [#allocation4], 1
    %s877 = scalar_lea.sflag [#allocation4], 1
    %878 = vsyncpa %s877, 1

</llo_original>
